<compile_context>
chip_gen: v7x
topology: tpu7x:2x2x1
jax: 0.10.0
libtpu: 0.0.40
codegen_flags: <defaults>
</compile_context>

<pallas_src>
import functools

import jax
import jax.numpy as jnp
from jax.experimental import pallas as pl
from jax.experimental.pallas import tpu as pltpu


def _round_up(x, m):
    return ((x + m - 1) // m) * m


def _scatter_kernel(start_ref, nblk_ref, key_ref, pf_ref, out_ref, *, S, tile_s):
    # start_ref/nblk_ref: SMEM (B*num_s,) int32 scalar-prefetch tables
    # key_ref: (tile_p, 1) int32   packed, segment-aligned combined keys
    # pf_ref : (C, tile_p)         packed pillar features (feature-major)
    # out_ref: (1, C, tile_s)      one batch element, one spatial tile
    b = pl.program_id(0)
    s = pl.program_id(1)
    k = pl.program_id(2)
    t = b * pl.num_programs(1) + s
    nb = nblk_ref[t]

    # Empty BEV tile fast path: one zero store, no accumulator traffic.
    @pl.when(jnp.logical_and(k == 0, nb == 0))
    def _():
        out_ref[...] = jnp.zeros_like(out_ref)

    @pl.when(k < nb)
    def _():
        tile_p = key_ref.shape[0]
        # Apply the tile base offset to the key column (tile_p x 1 op), not to
        # a (tile_p, tile_s) lane-index slab.
        key_rel = key_ref[...] - (b * S + s * tile_s)            # (tile_p, 1)
        cell = jax.lax.broadcasted_iota(jnp.int32, (1, tile_s), 1)
        onehot = (key_rel == cell).astype(pf_ref.dtype)          # (tile_p, tile_s)
        # (C, tile_p) @ (tile_p, tile_s) -> (C, tile_s): the scatter, on the MXU
        contrib = jnp.dot(pf_ref[...], onehot,
                          preferred_element_type=jnp.float32)
        contrib = contrib.astype(out_ref.dtype)[None]

        @pl.when(k == 0)
        def _():
            out_ref[...] = contrib          # overwrite: no zero-init pass

        @pl.when(k > 0)
        def _():
            out_ref[...] += contrib         # accumulate directly in the out block


def point_pillar_scatter(batch_dict, *, num_bev_features, grid_size, batch_size,
                         tile_s=2048, tile_p=512, max_pillars_per_tile=None,
                         vmem_budget_bytes=24 * 1024 * 1024):
    """JAX/Pallas equivalent of PointPillarScatter.forward.

    batch_size must be passed statically (the PyTorch code derives it from
    coords[:, 0].max() at runtime, which has no static-shape equivalent).
    Rows with coords[:, 0] < 0 are treated as padding and ignored.
    """
    nx, ny, nz = grid_size
    assert nz == 1

    pillar_features = batch_dict['pillar_features']            # (P, C)
    coords = batch_dict['voxel_coords'].astype(jnp.int32)      # (P, 4) [b, z, y, x]
    voxel_features = batch_dict['voxel_features']               # (P, max_pts, >=4)

    # glue: raw-points mapping is just a slice + dict bookkeeping
    batch_dict['raw_points_mapped'] = {
        'coords': coords,
        'raw_points': voxel_features[:, :, :4],
    }

    P, C = pillar_features.shape
    assert C == num_bev_features
    S = nz * nx * ny
    assert batch_size * S < 2 ** 30, "combined key must fit int32"

    dt = pillar_features.dtype
    itemsize = jnp.dtype(dt).itemsize

    # ---- tile selection (VMEM-budget aware; no tile_s | S requirement) ------
    tile_p = max(128, min(_round_up(tile_p, 128), _round_up(max(P, 1), 128)))

    def vmem_est(ts):
        return (tile_p * ts * itemsize        # one-hot slab
                + 2 * C * ts * itemsize       # double-buffered output block
                + 2 * C * tile_p * itemsize   # double-buffered feature block
                + 2 * tile_p * 4)             # double-buffered key column

    if S <= max(tile_s, 128) and vmem_est(S) <= vmem_budget_bytes:
        tile_s = S                            # single full-width tile (block == full dim)
    else:
        tile_s = max(128, (min(tile_s, S) // 128) * 128)
        while tile_s > 128 and vmem_est(tile_s) > vmem_budget_bytes:
            tile_s -= 128
    num_s = pl.cdiv(S, tile_s)                # partial last tile: OOB writes discarded
    n_seg = batch_size * num_s

    if max_pillars_per_tile is None:
        # unique (batch, voxel) coords -> at most tile_s pillars per spatial tile
        max_pillars_per_tile = tile_s
    # segment-aligned blocks -> exact block count per tile, no +1 straddle
    max_kblocks = max(1, pl.cdiv(max_pillars_per_tile, tile_p))

    # static bound on the number of segment-aligned pillar blocks
    n_blocks_max = pl.cdiv(max(P, 1), tile_p) + min(n_seg, max(P, 1))
    P_pack = n_blocks_max * tile_p
    max_kblocks = min(max_kblocks, n_blocks_max)

    # ---- wrapper-side prep (plain JAX, once per call) ------------------------
    BIG = jnp.int32(2 ** 30)                  # sentinel key: never matches a cell
    flat_idx = coords[:, 1] + coords[:, 2] * nx + coords[:, 3]   # z + y*nx + x
    valid = coords[:, 0] >= 0
    key = jnp.where(valid, coords[:, 0] * S + flat_idx, BIG).astype(jnp.int32)

    order = jnp.argsort(key)
    key_sorted = key[order]

    # per-(batch, spatial-tile) segment tables
    t_ids = jnp.arange(n_seg, dtype=jnp.int32)
    b_of_t = t_ids // num_s
    s_of_t = t_ids % num_s
    lo = b_of_t * S + s_of_t * tile_s
    hi = b_of_t * S + jnp.minimum((s_of_t + 1) * tile_s, S)
    start_p = jnp.searchsorted(key_sorted, lo, side='left').astype(jnp.int32)
    end_p = jnp.searchsorted(key_sorted, hi, side='left').astype(jnp.int32)
    cnt = end_p - start_p
    nblk = ((cnt + tile_p - 1) // tile_p).astype(jnp.int32)      # exact blocks/tile
    blk_start = (jnp.cumsum(nblk) - nblk).astype(jnp.int32)
    # empty segments point at block 0 so consecutive empty tiles elide DMA
    start_blk_tbl = jnp.where(nblk > 0, blk_start, 0).astype(jnp.int32)

    # segment-aligned packing: destination slot of every sorted pillar
    b_sorted = key_sorted // S
    flat_sorted = key_sorted - b_sorted * S
    seg_sorted = jnp.clip(b_sorted * num_s + flat_sorted // tile_s, 0, n_seg - 1)
    rank = jnp.arange(P, dtype=jnp.int32)
    pos_in_seg = rank - start_p[seg_sorted]
    dst_sorted = blk_start[seg_sorted] * tile_p + pos_in_seg
    valid_sorted = key_sorted < batch_size * S
    dst_sorted = jnp.where(valid_sorted, dst_sorted, P_pack)     # OOB -> dropped

    # destination of each ORIGINAL pillar row (inverse permutation via scatter)
    dst = jnp.zeros((P,), jnp.int32).at[order].set(dst_sorted)

    # packed inputs: fused "gather + transpose" = one scatter from the original
    # feature-major layout; padding slots hold sentinel keys / zero features.
    key_pack = (jnp.full((P_pack,), BIG, jnp.int32)
                .at[dst].set(key, mode='drop')
                .reshape(P_pack, 1))
    pf_pack = (jnp.zeros((C, P_pack), dt)
               .at[:, dst].set(pillar_features.T, mode='drop'))

    # ---- data-dependent index map (scalar-prefetch refs are trailing args) ---
    def _pillar_block(b, s, k, start_ref, nblk_ref):
        t = b * num_s + s
        nb = nblk_ref[t]
        # skipped k steps re-request the last valid block -> DMA is elided
        blk = start_ref[t] + jnp.minimum(k, jnp.maximum(nb - 1, 0))
        return jnp.minimum(blk, n_blocks_max - 1)

    kernel = functools.partial(_scatter_kernel, S=S, tile_s=tile_s)

    out = pl.pallas_call(
        kernel,
        out_shape=jax.ShapeDtypeStruct((batch_size, C, S), dt),
        grid_spec=pltpu.PrefetchScalarGridSpec(
            num_scalar_prefetch=2,
            grid=(batch_size, num_s, max_kblocks),
            in_specs=[
                pl.BlockSpec(
                    (tile_p, 1),
                    lambda b, s, k, st, nb: (_pillar_block(b, s, k, st, nb), 0)),
                pl.BlockSpec(
                    (C, tile_p),
                    lambda b, s, k, st, nb: (0, _pillar_block(b, s, k, st, nb))),
            ],
            out_specs=pl.BlockSpec((1, C, tile_s),
                                   lambda b, s, k, st, nb: (b, 0, s)),
        ),
        compiler_params=pltpu.CompilerParams(
            dimension_semantics=("parallel", "parallel", "arbitrary"),
            vmem_limit_bytes=32 * 1024 * 1024),
    )(start_blk_tbl, nblk, key_pack, pf_pack)

    # (B, C, nz*ny*nx) -> (B, C*nz, ny, nx)   [NCHW]
    batch_dict['spatial_features'] = out.reshape(batch_size, C * nz, ny, nx)
    return batch_dict


def _reference_scatter(pillar_features, coords, nx, ny, nz, batch_size):
    """Pure-JAX reference (mirrors the PyTorch loop; drops invalid rows)."""
    C = pillar_features.shape[1]
    S = nz * nx * ny
    c = coords.astype(jnp.int32)
    idx = c[:, 1] + c[:, 2] * nx + c[:, 3]
    b = jnp.where(c[:, 0] >= 0, c[:, 0], batch_size)   # invalid -> OOB -> drop
    out = jnp.zeros((batch_size, C, S), pillar_features.dtype)
    out = out.at[b, :, idx].set(pillar_features, mode='drop')
    return out.reshape(batch_size, C * nz, ny, nx)


if __name__ == "__main__":
    rng = jax.random.PRNGKey(0)

    # small config: grid 16x16x1, 8 BEV features, 2 batches, 200 unique pillars
    # per batch (> tile_p so the pillar-block reduction axis is exercised) plus
    # 2 padding rows (batch_idx = -1) to exercise validity handling.
    nx, ny, nz = 16, 16, 1
    num_bev_features = 8
    batch_size = 2
    pillars_per_batch = 200
    max_points = 8

    k1, k2, k3 = jax.random.split(rng, 3)

    coord_rows = []
    for b in range(batch_size):
        flat = jax.random.permutation(
            jax.random.fold_in(k1, b), nx * ny)[:pillars_per_batch]
        y = flat // nx
        x = flat % nx
        bcol = jnp.full_like(flat, b)
        zcol = jnp.zeros_like(flat)
        coord_rows.append(jnp.stack([bcol, zcol, y, x], axis=1))
    pad_rows = jnp.array([[-1, 0, 0, 0], [-1, 0, 0, 0]], dtype=jnp.int32)
    coords = jnp.concatenate(
        [jnp.concatenate(coord_rows, axis=0).astype(jnp.int32), pad_rows], axis=0)
    P = coords.shape[0]

    pillar_features = jax.random.normal(
        k2, (P, num_bev_features), dtype=jnp.float32)
    voxel_features = jax.random.normal(
        k3, (P, max_points, 6), dtype=jnp.float32)

    batch_dict = {
        'pillar_features': pillar_features,
        'voxel_coords': coords,
        'voxel_features': voxel_features,
    }

    out_dict = point_pillar_scatter(
        batch_dict,
        num_bev_features=num_bev_features,
        grid_size=(nx, ny, nz),
        batch_size=batch_size,
        tile_s=2048,   # auto-capped to the 256-cell grid for this small demo
        tile_p=128,    # small pillar block so the k reduction axis is exercised
    )
    spatial = jax.block_until_ready(out_dict['spatial_features'])

    # correctness check against plain-JAX reference
    ref = _reference_scatter(pillar_features, coords, nx, ny, nz, batch_size)
    assert spatial.shape == (batch_size, num_bev_features * nz, ny, nx)
    assert jnp.allclose(spatial, ref, atol=1e-5, rtol=1e-5)

    # TODO(synk): batch_size is a static argument; the dynamic
    # `coords[:,0].max()+1` of the PyTorch code has no static-shape equivalent.
    print("KERNEL_OK")
</pallas_src>

<mosaic_0001>
module attributes {stable_mosaic.version = 11 : i64} {
  func.func @_scatter_kernel(%arg0: i32, %arg1: i32, %arg2: i32, %arg3: memref<2xi32, #tpu.memory_space<smem>>, %arg4: memref<2xi32, #tpu.memory_space<smem>>, %arg5: memref<128x1xi32, #tpu.memory_space<vmem>>, %arg6: memref<8x128xf32, #tpu.memory_space<vmem>>, %arg7: memref<1x8x256xf32, #tpu.memory_space<vmem>>) attributes {dimension_semantics = [#tpu.dimension_semantics<parallel>, #tpu.dimension_semantics<parallel>, #tpu.dimension_semantics<arbitrary>], iteration_bounds = array<i64: 2, 1, 2>, scalar_prefetch = 2 : i64, scratch_operands = 0 : i64, tpu.core_type = #tpu.core_type<tc>, window_params = [{transform_indices = @transform_0, window_bounds = array<i64: 128, 1>}, {transform_indices = @transform_1, window_bounds = array<i64: 8, 128>}, {transform_indices = @transform_2, window_bounds = array<i64: 1, 8, 256>}]} {
    %c1_i32 = arith.constant 1 : i32
    %0 = arith.muli %arg0, %c1_i32 : i32
    %1 = arith.addi %0, %arg1 : i32
    %2 = arith.index_cast %1 : i32 to index
    %3 = memref.load %arg4[%2] : memref<2xi32, #tpu.memory_space<smem>>
    %c0_i32 = arith.constant 0 : i32
    %4 = arith.cmpi eq, %arg2, %c0_i32 : i32
    %c0_i32_0 = arith.constant 0 : i32
    %5 = arith.cmpi eq, %3, %c0_i32_0 : i32
    %6 = arith.andi %4, %5 : i1
    %7 = arith.extui %6 : i1 to i32
    %c0_i32_1 = arith.constant 0 : i32
    %8 = arith.cmpi ne, %7, %c0_i32_1 : i32
    scf.if %8 {
      %cst = arith.constant 0.000000e+00 : f32
      %12 = vector.broadcast %cst : f32 to vector<1x8x256xf32>
      %c0 = arith.constant 0 : index
      %c0_3 = arith.constant 0 : index
      %c0_4 = arith.constant 0 : index
      %13 = vector.load %arg7[%c0, %c0_3, %c0_4] : memref<1x8x256xf32, #tpu.memory_space<vmem>>, vector<1x8x256xf32>
      tpu.vector_store %arg7[%c0, %c0_3, %c0_4], %12 {strides = array<i32>} : memref<1x8x256xf32, #tpu.memory_space<vmem>>, vector<1x8x256xf32>,
    } else {
    }
    %9 = arith.cmpi slt, %arg2, %3 : i32
    %10 = arith.extui %9 : i1 to i32
    %c0_i32_2 = arith.constant 0 : i32
    %11 = arith.cmpi ne, %10, %c0_i32_2 : i32
    scf.if %11 {
      %c0 = arith.constant 0 : index
      %c0_3 = arith.constant 0 : index
      %12 = vector.load %arg5[%c0, %c0_3] : memref<128x1xi32, #tpu.memory_space<vmem>>, vector<128x1xi32>
      %c256_i32 = arith.constant 256 : i32
      %13 = arith.muli %arg0, %c256_i32 : i32
      %c256_i32_4 = arith.constant 256 : i32
      %14 = arith.muli %arg1, %c256_i32_4 : i32
      %15 = arith.addi %13, %14 : i32
      %16 = vector.broadcast %15 : i32 to vector<128x1xi32>
      %17 = arith.subi %12, %16 : vector<128x1xi32>
      %18 = tpu.iota {dimensions = array<i32: 1>} : vector<1x256xi32>
      %19 = vector.broadcast %17 : vector<128x1xi32> to vector<128x256xi32>
      %20 = vector.broadcast %18 : vector<1x256xi32> to vector<128x256xi32>
      %21 = arith.cmpi eq, %19, %20 : vector<128x256xi32>
      %22 = arith.extui %21 : vector<128x256xi1> to vector<128x256xi32>
      %23 = arith.sitofp %22 : vector<128x256xi32> to vector<128x256xf32>
      %c0_5 = arith.constant 0 : index
      %c0_6 = arith.constant 0 : index
      %24 = vector.load %arg6[%c0_5, %c0_6] : memref<8x128xf32, #tpu.memory_space<vmem>>, vector<8x128xf32>
      %cst = arith.constant dense<0.000000e+00> : vector<8x256xf32>
      %25 = tpu.matmul %24, %23, %cst {dimension_numbers = #tpu.dot_dimension_numbers<[1], [0], [0], [1], [0, 0, 1, 1], [], []>} : vector<8x128xf32>, vector<128x256xf32>, vector<8x256xf32> -> vector<8x256xf32>
      %26 = vector.shape_cast %25 : vector<8x256xf32> to vector<1x8x256xf32>
      %c0_i32_7 = arith.constant 0 : i32
      %27 = arith.cmpi eq, %arg2, %c0_i32_7 : i32
      %28 = arith.extui %27 : i1 to i32
      %c0_i32_8 = arith.constant 0 : i32
      %29 = arith.cmpi ne, %28, %c0_i32_8 : i32
      scf.if %29 {
        %c0_11 = arith.constant 0 : index
        %c0_12 = arith.constant 0 : index
        %c0_13 = arith.constant 0 : index
        %33 = vector.load %arg7[%c0_11, %c0_12, %c0_13] : memref<1x8x256xf32, #tpu.memory_space<vmem>>, vector<1x8x256xf32>
        tpu.vector_store %arg7[%c0_11, %c0_12, %c0_13], %26 {strides = array<i32>} : memref<1x8x256xf32, #tpu.memory_space<vmem>>, vector<1x8x256xf32>,
      } else {
      }
      %c0_i32_9 = arith.constant 0 : i32
      %30 = arith.cmpi sgt, %arg2, %c0_i32_9 : i32
      %31 = arith.extui %30 : i1 to i32
      %c0_i32_10 = arith.constant 0 : i32
      %32 = arith.cmpi ne, %31, %c0_i32_10 : i32
      scf.if %32 {
        %c0_11 = arith.constant 0 : index
        %c0_12 = arith.constant 0 : index
        %c0_13 = arith.constant 0 : index
        %33 = vector.load %arg7[%c0_11, %c0_12, %c0_13] : memref<1x8x256xf32, #tpu.memory_space<vmem>>, vector<1x8x256xf32>
        %34 = arith.addf %33, %26 : vector<1x8x256xf32>
        %c0_14 = arith.constant 0 : index
        %c0_15 = arith.constant 0 : index
        %c0_16 = arith.constant 0 : index
        %35 = vector.load %arg7[%c0_14, %c0_15, %c0_16] : memref<1x8x256xf32, #tpu.memory_space<vmem>>, vector<1x8x256xf32>
        tpu.vector_store %arg7[%c0_14, %c0_15, %c0_16], %34 {strides = array<i32>} : memref<1x8x256xf32, #tpu.memory_space<vmem>>, vector<1x8x256xf32>,
      } else {
      }
    } else {
    }
    return
  }
  func.func @transform_0(%arg0: i32, %arg1: i32, %arg2: i32, %arg3: memref<2xi32, #tpu.memory_space<smem>>, %arg4: memref<2xi32, #tpu.memory_space<smem>>) -> (i32, i32) {
    %c1_i32 = arith.constant 1 : i32
    %0 = arith.muli %arg0, %c1_i32 : i32
    %1 = arith.addi %0, %arg1 : i32
    %2 = arith.index_cast %1 : i32 to index
    %3 = memref.load %arg4[%2] : memref<2xi32, #tpu.memory_space<smem>>
    %4 = arith.index_cast %1 : i32 to index
    %5 = memref.load %arg3[%4] : memref<2xi32, #tpu.memory_space<smem>>
    %c1_i32_0 = arith.constant 1 : i32
    %6 = arith.subi %3, %c1_i32_0 : i32
    %c0_i32 = arith.constant 0 : i32
    %7 = arith.maxsi %6, %c0_i32 : i32
    %8 = arith.minsi %arg2, %7 : i32
    %9 = arith.addi %5, %8 : i32
    %c5_i32 = arith.constant 5 : i32
    %10 = arith.minsi %9, %c5_i32 : i32
    %c0_i32_1 = arith.constant 0 : i32
    %c0_i32_2 = arith.constant 0 : i32
    return %10, %c0_i32_1 : i32, i32
  }
  func.func @transform_1(%arg0: i32, %arg1: i32, %arg2: i32, %arg3: memref<2xi32, #tpu.memory_space<smem>>, %arg4: memref<2xi32, #tpu.memory_space<smem>>) -> (i32, i32) {
    %c1_i32 = arith.constant 1 : i32
    %0 = arith.muli %arg0, %c1_i32 : i32
    %1 = arith.addi %0, %arg1 : i32
    %2 = arith.index_cast %1 : i32 to index
    %3 = memref.load %arg4[%2] : memref<2xi32, #tpu.memory_space<smem>>
    %4 = arith.index_cast %1 : i32 to index
    %5 = memref.load %arg3[%4] : memref<2xi32, #tpu.memory_space<smem>>
    %c1_i32_0 = arith.constant 1 : i32
    %6 = arith.subi %3, %c1_i32_0 : i32
    %c0_i32 = arith.constant 0 : i32
    %7 = arith.maxsi %6, %c0_i32 : i32
    %8 = arith.minsi %arg2, %7 : i32
    %9 = arith.addi %5, %8 : i32
    %c5_i32 = arith.constant 5 : i32
    %10 = arith.minsi %9, %c5_i32 : i32
    %c0_i32_1 = arith.constant 0 : i32
    %c0_i32_2 = arith.constant 0 : i32
    return %c0_i32_1, %10 : i32, i32
  }
  func.func @transform_2(%arg0: i32, %arg1: i32, %arg2: i32, %arg3: memref<2xi32, #tpu.memory_space<smem>>, %arg4: memref<2xi32, #tpu.memory_space<smem>>) -> (i32, i32, i32) {
    %c0_i32 = arith.constant 0 : i32
    %c0_i32_0 = arith.constant 0 : i32
    return %arg0, %c0_i32, %arg1 : i32, i32, i32
  }
}

</mosaic_0001>

<llo_original>
// kernel: tpu_custom_call.1
$region0: #{tpu_custom_call.1}
  #allocation0 [shape = 'u32[]', space=smem, size = 0x4, offset = 0x4, fixed_abs, tag = 'smem constant byte address 0x4 - core index']
  #allocation1 [shape = 'u32[144,128]{1,0:T(1,128)}', space=vmem, size = 0x12000, scoped, tag = 'internal scratch']
  #allocation2 [shape = 's32[1]{0}', space=sflag, size = 0x4, scoped, tag = 'scoped memory for tpu_custom_call.1']
  #allocation3 [shape = 'u8[512]{0}', space=smem, size = 0x200, scoped, tag = 'prefetched SMEM operand 0']
  #allocation4 [shape = 'u8[512]{0}', space=smem, size = 0x200, scoped, tag = 'prefetched SMEM operand 1']
  %s0 = inlined_call_operand.vmem [shape: s32[2], index: 0, kind: input, shape index: {}]
  %s1 = inlined_call_operand.vmem [shape: s32[2], index: 1, kind: input, shape index: {}]
  %s2 = inlined_call_operand.vmem [shape: s32[768,1], index: 2, kind: input, shape index: {}]
  %s3 = inlined_call_operand.vmem [shape: f32[8,768], index: 3, kind: input, shape index: {}]
  %s4 = inlined_call_operand.hbm [shape: f32[2,8,256], index: 4, kind: output, shape index: {}]
  %s5 = sld [smem:[#allocation0]]
  $region57: #{tpu_custom_call.1} parent=0
    _
  %s7 = ssub.s32 1, %s5
  %s8 = scalar_select 0, %s7, %s5
  %s9 = sshll.u32 %s0, 4
  %s10 = int_to_ptr.vmem [resolvable:$true] %s9
  %12 = dma.vmem_to_smem %s10, 16, [#allocation3], [#allocation2]
  %s13 = sshll.u32 %s1, 4
  %s14 = int_to_ptr.vmem [resolvable:$true] %s13
  %16 = dma.vmem_to_smem %s14, 16, [#allocation4], [#allocation2]
  %17 = dma.done [#allocation2], 32
  %18 = sfence
  $region1: #{tpu_custom_call.1} parent=0
    #allocation5 [shape = 'u8[16384]{0}', space=vmem, size = 0x4000, scoped, tag = 'output window, operand 0']
    #allocation6 [shape = 's32[2]{0}', space=sflag, size = 0x8, scoped, tag = 'scoped memory for tpu_custom_call.1']
    %19 = vsyncpa [#allocation6], 0
    %s20 = scalar_lea.sflag [#allocation6], 1
    %21 = vsyncpa %s20, 0
    loop: start=0, step=1, limit=6
    $region2: #{tpu_custom_call.1} parent=1 // loop_pre_header
      _
    $region3: #{tpu_custom_call.1} parent=1 // loop_header
      %s23 = sphi 0, %s27
      %p24 = scmp.ge.s32.totalorder %s23, 6
      %s30 = sphi 0, %s49
      %s31 = sphi 0, %s45
      %s32 = sphi 0, %s41
      %s33 = sphi 0, %s30
      %s34 = sphi 0, %s31
      %s35 = sphi 0, %s32
      %s36 = sphi 0, %s33
      %s37 = sphi 0, %s34
      %s38 = sphi 0, %s35
      %s74 = sphi 0, %s76
      %s77 = sphi 0, %s74
      %s78 = sphi 0, %s77
      %s94 = sphi 0, %s78
      %s122 = sphi 0, %s124
      %s125 = sphi 0, %s122
      %s126 = sphi 0, %s125
      %s142 = sphi 0, %s126
      %s150 = sphi 0, %s152
      %s153 = sphi 0, %s150
      %s154 = sphi 0, %s153
      %s170 = sphi 0, %s154
    $region4: #{tpu_custom_call.1} parent=1 // loop_header_branch
      %26 = sbr.rel (%p24) target = $region8
    $region5: #{tpu_custom_call.1} parent=1 // loop_body
      %s28 = ssub.s32 %s23, 1
      %s29 = ssub.s32 %s23, 2
      %s39 = sadd.s32 1, %s32
      %p40 = scmp.ge.s32.totalorder %s39, 2
      %s41 = scalar_select %p40, 0, %s39
      %s42 = sadd.s32 1, %s31
      %s43 = scalar_select %p40, %s42, %s31
      %p44 = scmp.ge.s32.totalorder %s43, 1
      %s45 = scalar_select %p44, 0, %s43
      %s46 = sadd.s32 1, %s30
      %s47 = scalar_select %p44, %s46, %s30
      %p48 = scmp.ge.s32.totalorder %s47, 2
      %s49 = scalar_select %p48, 0, %s47
      %s50 = sadd.s32 %s30, %s31
      %s51 = sld [smem:[#allocation4 + %s50]]
      %s52 = sld [smem:[#allocation3 + %s50]]
      %s53 = ssub.s32 %s51, 1
      %p54 = scmp.gt.s32.totalorder %s53, 0
      %s55 = scalar_select %p54, %s53, 0
      %p56 = scmp.lt.s32.totalorder %s32, %s55
      %s57 = scalar_select %p56, %s32, %s55
      %s58 = sadd.s32 %s52, %s57
      %p59 = scmp.lt.s32.totalorder %s58, 5
      %s60 = scalar_select %p59, %s58, 5
      %s61 = sadd.s32 %s49, %s45
      %s62 = sld [smem:[#allocation4 + %s61]]
      %s63 = sld [smem:[#allocation3 + %s61]]
      %s64 = ssub.s32 %s62, 1
      %p65 = scmp.gt.s32.totalorder %s64, 0
      %s66 = scalar_select %p65, %s64, 0
      %p67 = scmp.lt.s32.totalorder %s41, %s66
      %s68 = scalar_select %p67, %s41, %s66
      %s69 = sadd.s32 %s63, %s68
      %p70 = scmp.lt.s32.totalorder %s69, 5
      %s71 = scalar_select %p70, %s69, 5
      %s72 = ssub.s32 %s60, %s71
      %p73 = scmp.eq.s32.totalorder %s72, 0
      %s75 = sadd.s32 %s74, 1
      %s76 = scalar_select %p73, %s74, %s75
      %p79 = pneg %p73
      %p80 = scmp.eq.s32.totalorder %s23, 3
      %p81 = por %p79, %p80
      %p82 = scmp.ne.s32.totalorder %s74, %s77
      %p83 = scmp.eq.s32.totalorder %s23, 0
      %p84 = por %p82, %p83
      %p85 = scmp.ne.s32.totalorder %s74, %s77
      %p86 = scmp.eq.s32.totalorder %s28, 3
      %p87 = por %p85, %p86
      %p88 = scmp.ne.s32.totalorder %s77, %s78
      %p89 = scmp.eq.s32.totalorder %s28, 0
      %p90 = por %p88, %p89
      %p91 = scmp.ne.s32.totalorder %s77, %s78
      %p92 = scmp.eq.s32.totalorder %s29, 3
      %p93 = por %p91, %p92
      %p95 = scmp.ne.s32.totalorder %s78, %s94
      %p96 = scmp.eq.s32.totalorder %s29, 0
      %p97 = por %p95, %p96
      %s98 = sadd.s32 %s30, %s31
      %s99 = sld [smem:[#allocation4 + %s98]]
      %s100 = sld [smem:[#allocation3 + %s98]]
      %s101 = ssub.s32 %s99, 1
      %p102 = scmp.gt.s32.totalorder %s101, 0
      %s103 = scalar_select %p102, %s101, 0
      %p104 = scmp.lt.s32.totalorder %s32, %s103
      %s105 = scalar_select %p104, %s32, %s103
      %s106 = sadd.s32 %s100, %s105
      %p107 = scmp.lt.s32.totalorder %s106, 5
      %s108 = scalar_select %p107, %s106, 5
      %s109 = sadd.s32 %s49, %s45
      %s110 = sld [smem:[#allocation4 + %s109]]
      %s111 = sld [smem:[#allocation3 + %s109]]
      %s112 = ssub.s32 %s110, 1
      %p113 = scmp.gt.s32.totalorder %s112, 0
      %s114 = scalar_select %p113, %s112, 0
      %p115 = scmp.lt.s32.totalorder %s41, %s114
      %s116 = scalar_select %p115, %s41, %s114
      %s117 = sadd.s32 %s111, %s116
      %p118 = scmp.lt.s32.totalorder %s117, 5
      %s119 = scalar_select %p118, %s117, 5
      %s120 = ssub.s32 %s108, %s119
      %p121 = scmp.eq.s32.totalorder %s120, 0
      %s123 = sadd.s32 %s122, 1
      %s124 = scalar_select %p121, %s122, %s123
      %p127 = pneg %p121
      %p128 = scmp.eq.s32.totalorder %s23, 3
      %p129 = por %p127, %p128
      %p130 = scmp.ne.s32.totalorder %s122, %s125
      %p131 = scmp.eq.s32.totalorder %s23, 0
      %p132 = por %p130, %p131
      %p133 = scmp.ne.s32.totalorder %s122, %s125
      %p134 = scmp.eq.s32.totalorder %s28, 3
      %p135 = por %p133, %p134
      %p136 = scmp.ne.s32.totalorder %s125, %s126
      %p137 = scmp.eq.s32.totalorder %s28, 0
      %p138 = por %p136, %p137
      %p139 = scmp.ne.s32.totalorder %s125, %s126
      %p140 = scmp.eq.s32.totalorder %s29, 3
      %p141 = por %p139, %p140
      %p143 = scmp.ne.s32.totalorder %s126, %s142
      %p144 = scmp.eq.s32.totalorder %s29, 0
      %p145 = por %p143, %p144
      %s146 = ssub.s32 %s30, %s49
      %s147 = ssub.s32 %s31, %s45
      %s148 = sor.u32 %s146, %s147
      %p149 = scmp.eq.s32.totalorder %s148, 0
      %s151 = sadd.s32 %s150, 1
      %s152 = scalar_select %p149, %s150, %s151
      %p155 = pneg %p149
      %p156 = scmp.eq.s32.totalorder %s23, 3
      %p157 = por %p155, %p156
      %p158 = scmp.ne.s32.totalorder %s150, %s153
      %p159 = scmp.eq.s32.totalorder %s23, 0
      %p160 = por %p158, %p159
      %p161 = scmp.ne.s32.totalorder %s150, %s153
      %p162 = scmp.eq.s32.totalorder %s28, 3
      %p163 = por %p161, %p162
      %p164 = scmp.ne.s32.totalorder %s153, %s154
      %p165 = scmp.eq.s32.totalorder %s28, 0
      %p166 = por %p164, %p165
      %p167 = scmp.ne.s32.totalorder %s153, %s154
      %p168 = scmp.eq.s32.totalorder %s29, 3
      %p169 = por %p167, %p168
      %p171 = scmp.ne.s32.totalorder %s154, %s170
      %p172 = scmp.eq.s32.totalorder %s29, 0
      %p173 = por %p171, %p172
      %p174 = scmp.le.s32.totalorder 1, %s23
      %p175 = scmp.lt.s32.totalorder %s23, 5
      %p176 = pnand %p174, %p175
      %p177 = pneg %p176
      // Predicated region
      $region9: #{tpu_custom_call.1} parent=5 // pred_check
        _
      $region10: #{tpu_custom_call.1} parent=5 // pred_check_branch
        %179 = sbr.rel (%p176) target = $region12
      $region11: #{tpu_custom_call.1} parent=5 // pred_region
        %s180 = ssub.s32 %s23, 1
      $region12: #{tpu_custom_call.1} parent=5 // pred_fallthru
        _
      %p181 = scmp.lt.s32.totalorder %s23, 4
      // Predicated region
      $region13: #{tpu_custom_call.1} parent=5 // pred_check
        %p182 = pneg %p181
      $region14: #{tpu_custom_call.1} parent=5 // pred_check_branch
        %184 = sbr.rel (%p182) target = $region16
      $region15: #{tpu_custom_call.1} parent=5 // pred_region
        // Predicated region
        $region17: #{tpu_custom_call.1} parent=15 // pred_check
          %p185 = pneg %p84
        $region18: #{tpu_custom_call.1} parent=15 // pred_check_branch
          %187 = sbr.rel (%p185) target = $region20
        $region19: #{tpu_custom_call.1} parent=15 // pred_region
          %s188 = sadd.s32 %s30, %s31
          %s189 = sld [smem:[#allocation4 + %s188]]
          %s190 = sld [smem:[#allocation3 + %s188]]
          %s191 = ssub.s32 %s189, 1
          %p192 = scmp.gt.s32.totalorder %s191, 0
          %s193 = scalar_select %p192, %s191, 0
          %p194 = scmp.lt.s32.totalorder %s32, %s193
          %s195 = scalar_select %p194, %s32, %s193
          %s196 = sadd.s32 %s190, %s195
          %p197 = scmp.lt.s32.totalorder %s196, 5
          %s198 = scalar_select %p197, %s196, 5
          %s199 = smul.u32 16, %s198
          %p200 = scmp.lt.s32.totalorder %s199, 95
          %s201 = scalar_select %p200, %s199, 95
          %s202 = smul.addr %s201, 8
          %s203 = scalar_lea.vmem %s2, %s202
          %s204 = sadd.s32 %s30, %s31
          %s205 = sld [smem:[#allocation4 + %s204]]
          %s206 = sld [smem:[#allocation3 + %s204]]
          %s207 = ssub.s32 %s205, 1
          %p208 = scmp.gt.s32.totalorder %s207, 0
          %s209 = scalar_select %p208, %s207, 0
          %p210 = scmp.lt.s32.totalorder %s32, %s209
          %s211 = scalar_select %p210, %s32, %s209
          %s212 = sadd.s32 %s206, %s211
          %p213 = scmp.lt.s32.totalorder %s212, 5
          %s214 = scalar_select %p213, %s212, 5
          %s215 = smul.u32 16, %s214
        $region20: #{tpu_custom_call.1} parent=15 // pred_fallthru
          _
        // Predicated region
        $region21: #{tpu_custom_call.1} parent=15 // pred_check
          %p216 = pneg %p132
        $region22: #{tpu_custom_call.1} parent=15 // pred_check_branch
          %218 = sbr.rel (%p216) target = $region24
        $region23: #{tpu_custom_call.1} parent=15 // pred_region
          %s219 = sadd.s32 %s30, %s31
          %s220 = sld [smem:[#allocation4 + %s219]]
          %s221 = sld [smem:[#allocation3 + %s219]]
          %s222 = ssub.s32 %s220, 1
          %p223 = scmp.gt.s32.totalorder %s222, 0
          %s224 = scalar_select %p223, %s222, 0
          %p225 = scmp.lt.s32.totalorder %s32, %s224
          %s226 = scalar_select %p225, %s32, %s224
          %s227 = sadd.s32 %s221, %s226
          %p228 = scmp.lt.s32.totalorder %s227, 5
          %s229 = scalar_select %p228, %s227, 5
          %p230 = scmp.lt.s32.totalorder %s229, 5
          %s231 = scalar_select %p230, %s229, 5
          %s232 = smul.addr %s231, 8
          %s233 = scalar_lea.vmem %s3, %s232
          %s234 = sadd.s32 %s30, %s31
          %s235 = sld [smem:[#allocation4 + %s234]]
          %s236 = sld [smem:[#allocation3 + %s234]]
          %s237 = ssub.s32 %s235, 1
          %p238 = scmp.gt.s32.totalorder %s237, 0
          %s239 = scalar_select %p238, %s237, 0
          %p240 = scmp.lt.s32.totalorder %s32, %s239
          %s241 = scalar_select %p240, %s32, %s239
          %s242 = sadd.s32 %s236, %s241
          %p243 = scmp.lt.s32.totalorder %s242, 5
          %s244 = scalar_select %p243, %s242, 5
        $region24: #{tpu_custom_call.1} parent=15 // pred_fallthru
          _
      $region16: #{tpu_custom_call.1} parent=5 // pred_fallthru
        _
      %p245 = scmp.le.s32.totalorder 1, %s23
      %p246 = scmp.lt.s32.totalorder %s23, 5
      %p247 = pnand %p245, %p246
      %p248 = pneg %p247
      // Predicated region
      $region25: #{tpu_custom_call.1} parent=5 // pred_check
        _
      $region26: #{tpu_custom_call.1} parent=5 // pred_check_branch
        %250 = sbr.rel (%p247) target = $region28
      $region27: #{tpu_custom_call.1} parent=5 // pred_region
        %s251 = ssub.s32 %s23, 1
        %s252 = sadd.s32 %s33, %s34
        %s253 = sld [smem:[#allocation4 + %s252]]
        %s254 = sld [smem:[#allocation3 + %s252]]
        %s255 = ssub.s32 %s253, 1
        %p256 = scmp.gt.s32.totalorder %s255, 0
        %s257 = scalar_select %p256, %s255, 0
        %p258 = scmp.lt.s32.totalorder %s35, %s257
        %s259 = scalar_select %p258, %s35, %s257
        %s260 = sadd.s32 %s254, %s259
        %p261 = scmp.lt.s32.totalorder %s260, 5
        %s262 = scalar_select %p261, %s260, 5
        %s263 = smul.u32 16, %s262
        %p264 = scmp.lt.s32.totalorder %s263, 95
        %s265 = scalar_select %p264, %s263, 95
        %s266 = smul.addr %s265, 8
        %s267 = scalar_lea.vmem %s2, %s266
        %p268 = pneg %p90
        %p269 = pneg %p87
        %s270 = sadd.s32 %s33, %s34
        %s271 = sld [smem:[#allocation4 + %s270]]
        %s272 = sld [smem:[#allocation3 + %s270]]
        %s273 = ssub.s32 %s271, 1
        %p274 = scmp.gt.s32.totalorder %s273, 0
        %s275 = scalar_select %p274, %s273, 0
        %p276 = scmp.lt.s32.totalorder %s35, %s275
        %s277 = scalar_select %p276, %s35, %s275
        %s278 = sadd.s32 %s272, %s277
        %p279 = scmp.lt.s32.totalorder %s278, 5
        %s280 = scalar_select %p279, %s278, 5
        %p281 = scmp.lt.s32.totalorder %s280, 5
        %s282 = scalar_select %p281, %s280, 5
        %s283 = smul.addr %s282, 8
        %s284 = scalar_lea.vmem %s3, %s283
        %p285 = pneg %p138
        %p286 = pneg %p135
        %p287 = pneg %p166
        %p288 = pneg %p163
        %s289 = sand.u32 %s153, 1
        %s290 = scalar_lea.sflag [#allocation6], %s289
        %s291 = sand.u32 %s153, 1
        %s292 = smul.addr %s291, 16
        %s293 = scalar_lea.vmem [#allocation5], %s292
        %s294 = sadd.s32 %s33, %s34
        %s295 = sld [smem:[#allocation4 + %s294]]
        %s296 = sld [smem:[#allocation3 + %s294]]
        %s297 = ssub.s32 %s295, 1
        %p298 = scmp.gt.s32.totalorder %s297, 0
        %s299 = scalar_select %p298, %s297, 0
        %p300 = scmp.lt.s32.totalorder %s35, %s299
        %s301 = scalar_select %p300, %s35, %s299
        %s302 = sadd.s32 %s296, %s301
        %p303 = scmp.lt.s32.totalorder %s302, 5
        %s304 = scalar_select %p303, %s302, 5
        %s305 = smul.u32 16, %s304
        %p306 = scmp.lt.s32.totalorder %s305, 95
        %s307 = scalar_select %p306, %s305, 95
        %s308 = smul.addr %s307, 8
        %s309 = scalar_lea.vmem %s2, %s308
        %s310 = sadd.s32 %s33, %s34
        %s311 = sld [smem:[#allocation4 + %s310]]
        %s312 = sld [smem:[#allocation3 + %s310]]
        %s313 = ssub.s32 %s311, 1
        %p314 = scmp.gt.s32.totalorder %s313, 0
        %s315 = scalar_select %p314, %s313, 0
        %p316 = scmp.lt.s32.totalorder %s35, %s315
        %s317 = scalar_select %p316, %s35, %s315
        %s318 = sadd.s32 %s312, %s317
        %p319 = scmp.lt.s32.totalorder %s318, 5
        %s320 = scalar_select %p319, %s318, 5
        %s321 = smul.u32 16, %s320
        %s322 = sadd.s32 %s33, %s34
        %s323 = sld [smem:[#allocation4 + %s322]]
        %s324 = sld [smem:[#allocation3 + %s322]]
        %s325 = ssub.s32 %s323, 1
        %p326 = scmp.gt.s32.totalorder %s325, 0
        %s327 = scalar_select %p326, %s325, 0
        %p328 = scmp.lt.s32.totalorder %s35, %s327
        %s329 = scalar_select %p328, %s35, %s327
        %s330 = sadd.s32 %s324, %s329
        %p331 = scmp.lt.s32.totalorder %s330, 5
        %s332 = scalar_select %p331, %s330, 5
        %p333 = scmp.lt.s32.totalorder %s332, 5
        %s334 = scalar_select %p333, %s332, 5
        %s335 = smul.addr %s334, 8
        %s336 = scalar_lea.vmem %s3, %s335
        %s337 = sadd.s32 %s33, %s34
        %s338 = sld [smem:[#allocation4 + %s337]]
        %s339 = sld [smem:[#allocation3 + %s337]]
        %s340 = ssub.s32 %s338, 1
        %p341 = scmp.gt.s32.totalorder %s340, 0
        %s342 = scalar_select %p341, %s340, 0
        %p343 = scmp.lt.s32.totalorder %s35, %s342
        %s344 = scalar_select %p343, %s35, %s342
        %s345 = sadd.s32 %s339, %s344
        %p346 = scmp.lt.s32.totalorder %s345, 5
        %s347 = scalar_select %p346, %s345, 5
        %s348 = smul.u32 2, %s34
        %s349 = sadd.s32 %s33, %s34
        %s350 = sld [smem:[#allocation4 + %s349]]
        %p351 = scmp.eq.s32.totalorder %s35, 0
        %p352 = scmp.eq.s32.totalorder %s350, 0
        %p353 = pnand %p351, %p352
        %p354 = pneg %p353
        // Predicated region
        $region29: #{tpu_custom_call.1} parent=27 // pred_check
          _
        $region30: #{tpu_custom_call.1} parent=27 // pred_check_branch
          %356 = sbr.rel (%p353) target = $region32
        $region31: #{tpu_custom_call.1} parent=27 // pred_region
          %357 = vst [vmem:[%s293] sm:$0xff] 0.0
          %358 = vst [vmem:[%s293 + $0x8] sm:$0xff] 0.0
        $region32: #{tpu_custom_call.1} parent=27 // pred_fallthru
          _
        %p359 = scmp.lt.s32.totalorder %s35, %s350
        // Predicated region
        $region33: #{tpu_custom_call.1} parent=27 // pred_check
          %p360 = pneg %p359
        $region34: #{tpu_custom_call.1} parent=27 // pred_check_branch
          %362 = sbr.rel (%p360) target = $region36
        $region35: #{tpu_custom_call.1} parent=27 // pred_region
          %v363 = vld [vmem:[%s309] sm:$0xff]
          %v364 = vld [vmem:[%s309 + $0x8] sm:$0xff]
          %v365 = vld [vmem:[%s309 + $0x10] sm:$0xff]
          %v366 = vld [vmem:[%s309 + $0x18] sm:$0xff]
          %v367 = vld [vmem:[%s309 + $0x20] sm:$0xff]
          %v368 = vld [vmem:[%s309 + $0x28] sm:$0xff]
          %v369 = vld [vmem:[%s309 + $0x30] sm:$0xff]
          %v370 = vld [vmem:[%s309 + $0x38] sm:$0xff]
          %v371 = vld [vmem:[%s309 + $0x40] sm:$0xff]
          %v372 = vld [vmem:[%s309 + $0x48] sm:$0xff]
          %v373 = vld [vmem:[%s309 + $0x50] sm:$0xff]
          %v374 = vld [vmem:[%s309 + $0x58] sm:$0xff]
          %v375 = vld [vmem:[%s309 + $0x60] sm:$0xff]
          %v376 = vld [vmem:[%s309 + $0x68] sm:$0xff]
          %v377 = vld [vmem:[%s309 + $0x70] sm:$0xff]
          %v378 = vld [vmem:[%s309 + $0x78] sm:$0xff]
          %s379 = smul.u32 %s33, 256
          %s380 = smul.u32 %s34, 256
          %s381 = sadd.s32 %s379, %s380
          %v382 = vstv %s381
          %v383 = vsub.s32 %v363, %v382
          %v384 = vsub.s32 %v364, %v382
          %v385 = vsub.s32 %v365, %v382
          %v386 = vsub.s32 %v366, %v382
          %v387 = vsub.s32 %v367, %v382
          %v388 = vsub.s32 %v368, %v382
          %v389 = vsub.s32 %v369, %v382
          %v390 = vsub.s32 %v370, %v382
          %v391 = vsub.s32 %v371, %v382
          %v392 = vsub.s32 %v372, %v382
          %v393 = vsub.s32 %v373, %v382
          %v394 = vsub.s32 %v374, %v382
          %v395 = vsub.s32 %v375, %v382
          %v396 = vsub.s32 %v376, %v382
          %v397 = vsub.s32 %v377, %v382
          %v398 = vsub.s32 %v378, %v382
          %v399 = vlaneseq
          %v400 = vand.u32 %v399, 127
          %v401 = vadd.s32 %v400, 128
          %402 = vset.pattern.permute.xlu0 0
          %403 = vperm.xlu0 %402, %v383
          %v404 = vpop.permute.xlu0 %403
          %405 = vset.pattern.permute.xlu0 0
          %406 = vperm.xlu0 %405, %v384
          %v407 = vpop.permute.xlu0 %406
          %408 = vset.pattern.permute.xlu0 0
          %409 = vperm.xlu0 %408, %v385
          %v410 = vpop.permute.xlu0 %409
          %411 = vset.pattern.permute.xlu0 0
          %412 = vperm.xlu0 %411, %v386
          %v413 = vpop.permute.xlu0 %412
          %414 = vset.pattern.permute.xlu0 0
          %415 = vperm.xlu0 %414, %v387
          %v416 = vpop.permute.xlu0 %415
          %417 = vset.pattern.permute.xlu0 0
          %418 = vperm.xlu0 %417, %v388
          %v419 = vpop.permute.xlu0 %418
          %420 = vset.pattern.permute.xlu0 0
          %421 = vperm.xlu0 %420, %v389
          %v422 = vpop.permute.xlu0 %421
          %423 = vset.pattern.permute.xlu0 0
          %424 = vperm.xlu0 %423, %v390
          %v425 = vpop.permute.xlu0 %424
          %426 = vset.pattern.permute.xlu0 0
          %427 = vperm.xlu0 %426, %v391
          %v428 = vpop.permute.xlu0 %427
          %429 = vset.pattern.permute.xlu0 0
          %430 = vperm.xlu0 %429, %v392
          %v431 = vpop.permute.xlu0 %430
          %432 = vset.pattern.permute.xlu0 0
          %433 = vperm.xlu0 %432, %v393
          %v434 = vpop.permute.xlu0 %433
          %435 = vset.pattern.permute.xlu0 0
          %436 = vperm.xlu0 %435, %v394
          %v437 = vpop.permute.xlu0 %436
          %438 = vset.pattern.permute.xlu0 0
          %439 = vperm.xlu0 %438, %v395
          %v440 = vpop.permute.xlu0 %439
          %441 = vset.pattern.permute.xlu0 0
          %442 = vperm.xlu0 %441, %v396
          %v443 = vpop.permute.xlu0 %442
          %444 = vset.pattern.permute.xlu0 0
          %445 = vperm.xlu0 %444, %v397
          %v446 = vpop.permute.xlu0 %445
          %447 = vset.pattern.permute.xlu0 0
          %448 = vperm.xlu0 %447, %v398
          %v449 = vpop.permute.xlu0 %448
          %vm450 = vcmp.eq.s32.totalorder %v404, %v400
          %vm451 = vcmp.eq.s32.totalorder %v404, %v401
          %vm452 = vcmp.eq.s32.totalorder %v407, %v400
          %vm453 = vcmp.eq.s32.totalorder %v407, %v401
          %vm454 = vcmp.eq.s32.totalorder %v410, %v400
          %vm455 = vcmp.eq.s32.totalorder %v410, %v401
          %vm456 = vcmp.eq.s32.totalorder %v413, %v400
          %vm457 = vcmp.eq.s32.totalorder %v413, %v401
          %vm458 = vcmp.eq.s32.totalorder %v416, %v400
          %vm459 = vcmp.eq.s32.totalorder %v416, %v401
          %vm460 = vcmp.eq.s32.totalorder %v419, %v400
          %vm461 = vcmp.eq.s32.totalorder %v419, %v401
          %vm462 = vcmp.eq.s32.totalorder %v422, %v400
          %vm463 = vcmp.eq.s32.totalorder %v422, %v401
          %vm464 = vcmp.eq.s32.totalorder %v425, %v400
          %vm465 = vcmp.eq.s32.totalorder %v425, %v401
          %vm466 = vcmp.eq.s32.totalorder %v428, %v400
          %vm467 = vcmp.eq.s32.totalorder %v428, %v401
          %vm468 = vcmp.eq.s32.totalorder %v431, %v400
          %vm469 = vcmp.eq.s32.totalorder %v431, %v401
          %vm470 = vcmp.eq.s32.totalorder %v434, %v400
          %vm471 = vcmp.eq.s32.totalorder %v434, %v401
          %vm472 = vcmp.eq.s32.totalorder %v437, %v400
          %vm473 = vcmp.eq.s32.totalorder %v437, %v401
          %vm474 = vcmp.eq.s32.totalorder %v440, %v400
          %vm475 = vcmp.eq.s32.totalorder %v440, %v401
          %vm476 = vcmp.eq.s32.totalorder %v443, %v400
          %vm477 = vcmp.eq.s32.totalorder %v443, %v401
          %vm478 = vcmp.eq.s32.totalorder %v446, %v400
          %vm479 = vcmp.eq.s32.totalorder %v446, %v401
          %vm480 = vcmp.eq.s32.totalorder %v449, %v400
          %vm481 = vcmp.eq.s32.totalorder %v449, %v401
          %v482 = vsel %vm450, 1, 0
          %v483 = vsel %vm451, 1, 0
          %v484 = vsel %vm452, 1, 0
          %v485 = vsel %vm453, 1, 0
          %v486 = vsel %vm454, 1, 0
          %v487 = vsel %vm455, 1, 0
          %v488 = vsel %vm456, 1, 0
          %v489 = vsel %vm457, 1, 0
          %v490 = vsel %vm458, 1, 0
          %v491 = vsel %vm459, 1, 0
          %v492 = vsel %vm460, 1, 0
          %v493 = vsel %vm461, 1, 0
          %v494 = vsel %vm462, 1, 0
          %v495 = vsel %vm463, 1, 0
          %v496 = vsel %vm464, 1, 0
          %v497 = vsel %vm465, 1, 0
          %v498 = vsel %vm466, 1, 0
          %v499 = vsel %vm467, 1, 0
          %v500 = vsel %vm468, 1, 0
          %v501 = vsel %vm469, 1, 0
          %v502 = vsel %vm470, 1, 0
          %v503 = vsel %vm471, 1, 0
          %v504 = vsel %vm472, 1, 0
          %v505 = vsel %vm473, 1, 0
          %v506 = vsel %vm474, 1, 0
          %v507 = vsel %vm475, 1, 0
          %v508 = vsel %vm476, 1, 0
          %v509 = vsel %vm477, 1, 0
          %v510 = vsel %vm478, 1, 0
          %v511 = vsel %vm479, 1, 0
          %v512 = vsel %vm480, 1, 0
          %v513 = vsel %vm481, 1, 0
          %v514 = vcvt.s32.f32 %v482
          %v515 = vcvt.s32.f32 %v483
          %v516 = vcvt.s32.f32 %v484
          %v517 = vcvt.s32.f32 %v485
          %v518 = vcvt.s32.f32 %v486
          %v519 = vcvt.s32.f32 %v487
          %v520 = vcvt.s32.f32 %v488
          %v521 = vcvt.s32.f32 %v489
          %v522 = vcvt.s32.f32 %v490
          %v523 = vcvt.s32.f32 %v491
          %v524 = vcvt.s32.f32 %v492
          %v525 = vcvt.s32.f32 %v493
          %v526 = vcvt.s32.f32 %v494
          %v527 = vcvt.s32.f32 %v495
          %v528 = vcvt.s32.f32 %v496
          %v529 = vcvt.s32.f32 %v497
          %v530 = vcvt.s32.f32 %v498
          %v531 = vcvt.s32.f32 %v499
          %v532 = vcvt.s32.f32 %v500
          %v533 = vcvt.s32.f32 %v501
          %v534 = vcvt.s32.f32 %v502
          %v535 = vcvt.s32.f32 %v503
          %v536 = vcvt.s32.f32 %v504
          %v537 = vcvt.s32.f32 %v505
          %v538 = vcvt.s32.f32 %v506
          %v539 = vcvt.s32.f32 %v507
          %v540 = vcvt.s32.f32 %v508
          %v541 = vcvt.s32.f32 %v509
          %v542 = vcvt.s32.f32 %v510
          %v543 = vcvt.s32.f32 %v511
          %v544 = vcvt.s32.f32 %v512
          %v545 = vcvt.s32.f32 %v513
          %v546 = vld [vmem:[%s336] sm:$0xff]
          %547 = vmatprep.subr.mxu0 %v515
          %548 = vmatpush1.msra.mxu0 %v514
          %549 = vmatprep.subr.mxu0 %v517
          %550 = vmatpush1.msra.mxu0 %v516
          %551 = vmatprep.subr.mxu0 %v519
          %552 = vmatpush1.msra.mxu0 %v518
          %553 = vmatprep.subr.mxu0 %v521
          %554 = vmatpush1.msra.mxu0 %v520
          %555 = vmatprep.subr.mxu0 %v523
          %556 = vmatpush1.msra.mxu0 %v522
          %557 = vmatprep.subr.mxu0 %v525
          %558 = vmatpush1.msra.mxu0 %v524
          %559 = vmatprep.subr.mxu0 %v527
          %560 = vmatpush1.msra.mxu0 %v526
          %561 = vmatprep.subr.mxu0 %v529
          %562 = vmatpush1.msra.mxu0 %v528
          %563 = vmatprep.subr.mxu0 %v531
          %564 = vmatpush1.msra.mxu0 %v530
          %565 = vmatprep.subr.mxu0 %v533
          %566 = vmatpush1.msra.mxu0 %v532
          %567 = vmatprep.subr.mxu0 %v535
          %568 = vmatpush1.msra.mxu0 %v534
          %569 = vmatprep.subr.mxu0 %v537
          %570 = vmatpush1.msra.mxu0 %v536
          %571 = vmatprep.subr.mxu0 %v539
          %572 = vmatpush1.msra.mxu0 %v538
          %573 = vmatprep.subr.mxu0 %v541
          %574 = vmatpush1.msra.mxu0 %v540
          %575 = vmatprep.subr.mxu0 %v543
          %576 = vmatpush1.msra.mxu0 %v542
          %577 = vmatprep.subr.mxu0 %v545
          %578 = vmatpush1.msra.mxu0 %v544
          %579 = vmatprep.subr.mxu0 0.0
          %580 = vmatpush1.msra.mxu0 0.0
          %581 = vmatprep.subr.mxu0 0.0
          %582 = vmatpush1.msra.mxu0 0.0
          %583 = vmatprep.subr.mxu0 0.0
          %584 = vmatpush1.msra.mxu0 0.0
          %585 = vmatprep.subr.mxu0 0.0
          %586 = vmatpush1.msra.mxu0 0.0
          %587 = vmatprep.subr.mxu0 0.0
          %588 = vmatpush1.msra.mxu0 0.0
          %589 = vmatprep.subr.mxu0 0.0
          %590 = vmatpush1.msra.mxu0 0.0
          %591 = vmatprep.subr.mxu0 0.0
          %592 = vmatpush1.msra.mxu0 0.0
          %593 = vmatprep.subr.mxu0 0.0
          %594 = vmatpush1.msra.mxu0 0.0
          %595 = vmatprep.subr.mxu0 0.0
          %596 = vmatpush1.msra.mxu0 0.0
          %597 = vmatprep.subr.mxu0 0.0
          %598 = vmatpush1.msra.mxu0 0.0
          %599 = vmatprep.subr.mxu0 0.0
          %600 = vmatpush1.msra.mxu0 0.0
          %601 = vmatprep.subr.mxu0 0.0
          %602 = vmatpush1.msra.mxu0 0.0
          %603 = vmatprep.subr.mxu0 0.0
          %604 = vmatpush1.msra.mxu0 0.0
          %605 = vmatprep.subr.mxu0 0.0
          %606 = vmatpush1.msra.mxu0 0.0
          %607 = vmatprep.subr.mxu0 0.0
          %608 = vmatpush1.msra.mxu0 0.0
          %609 = vmatprep.subr.mxu0 0.0
          %610 = vmatpush1.msra.mxu0 0.0
          %611 = vmatprep.mubr.f32.mxu0 0.0
          %612 = vmatmul.mubr.f32.gmra.mrb[0].mxu0 %v546
          %v613 = vpop.f32.mrb[0].mxu0
          %v614 = vadd.f32 0.0, %v613
          %v615 = vpop.f32.mrb[0].mxu0
          %v616 = vadd.f32 0.0, %v615
          %617 = vdwg.mxu0
          // Predicated region
          $region37: #{tpu_custom_call.1} parent=35 // pred_check
            %p618 = pneg %p351
          $region38: #{tpu_custom_call.1} parent=35 // pred_check_branch
            %620 = sbr.rel (%p618) target = $region40
          $region39: #{tpu_custom_call.1} parent=35 // pred_region
            %621 = vst [vmem:[%s293] sm:$0xff] %v614
            %622 = vst [vmem:[%s293 + $0x8] sm:$0xff] %v616
          $region40: #{tpu_custom_call.1} parent=35 // pred_fallthru
            _
          %p623 = scmp.gt.s32.totalorder %s35, 0
          // Predicated region
          $region41: #{tpu_custom_call.1} parent=35 // pred_check
            %p624 = pneg %p623
          $region42: #{tpu_custom_call.1} parent=35 // pred_check_branch
            %626 = sbr.rel (%p624) target = $region44
          $region43: #{tpu_custom_call.1} parent=35 // pred_region
            %v627 = vld [vmem:[%s293] sm:$0xff]
            %v628 = vld [vmem:[%s293 + $0x8] sm:$0xff]
            %v629 = vadd.f32 %v627, %v614
            %v630 = vadd.f32 %v628, %v616
            %631 = vst [vmem:[%s293] sm:$0xff] %v629
            %632 = vst [vmem:[%s293 + $0x8] sm:$0xff] %v630
          $region44: #{tpu_custom_call.1} parent=35 // pred_fallthru
            _
        $region36: #{tpu_custom_call.1} parent=27 // pred_fallthru
          _
        %s633 = sand.u32 %s153, 1
        %s634 = scalar_lea.sflag [#allocation6], %s633
        %s635 = sand.u32 %s153, 1
        %s636 = smul.addr %s635, 16
        %s637 = scalar_lea.vmem [#allocation5], %s636
        // Predicated region
        $region45: #{tpu_custom_call.1} parent=27 // pred_check
          %p638 = pneg %p163
        $region46: #{tpu_custom_call.1} parent=27 // pred_check_branch
          %640 = sbr.rel (%p638) target = $region48
        $region47: #{tpu_custom_call.1} parent=27 // pred_region
          %s641 = smul.u32 2, %s34
          %s643 = ssub.s32 256, 256
          %644 = vsyncadd %s634, %s643
          %s645 = smul.addr %s33, 2
          %s646 = sadd.s32 %s641, %s645
          %s647 = smul.addr %s646, 128
          %s648 = scalar_lea.hbm %s4, %s647
          %s650 = sshll.u32 %s637, 4
          %s651 = int_to_ptr.vmem [resolvable:$true] %s650
          %653 = dma.vmem_to_hbm [thread:$0]  %s651, 256, %s648, %s634
        $region48: #{tpu_custom_call.1} parent=27 // pred_fallthru
          _
      $region28: #{tpu_custom_call.1} parent=5 // pred_fallthru
        _
      %p654 = scmp.le.s32.totalorder 2, %s23
      // Predicated region
      $region49: #{tpu_custom_call.1} parent=5 // pred_check
        %p655 = pneg %p654
      $region50: #{tpu_custom_call.1} parent=5 // pred_check_branch
        %657 = sbr.rel (%p655) target = $region52
      $region51: #{tpu_custom_call.1} parent=5 // pred_region
        %s658 = ssub.s32 %s23, 2
        // Predicated region
        $region53: #{tpu_custom_call.1} parent=51 // pred_check
          %p659 = pneg %p169
        $region54: #{tpu_custom_call.1} parent=51 // pred_check_branch
          %661 = sbr.rel (%p659) target = $region56
        $region55: #{tpu_custom_call.1} parent=51 // pred_region
          %s662 = sand.u32 %s154, 1
          %s663 = scalar_lea.sflag [#allocation6], %s662
          %s664 = sand.u32 %s154, 1
          %s665 = smul.addr %s664, 16
          %s666 = scalar_lea.vmem [#allocation5], %s665
          %667 = dma.done %s663, 256
        $region56: #{tpu_custom_call.1} parent=51 // pred_fallthru
          _
      $region52: #{tpu_custom_call.1} parent=5 // pred_fallthru
        _
    $region6: #{tpu_custom_call.1} parent=1 // loop_footer
      %s27 = sadd.s32 1, %s23
    $region7: #{tpu_custom_call.1} parent=1 // loop_footer_branch
      %22 = sbr.rel target = $region3
    $region8: #{tpu_custom_call.1} parent=1 // loop_exit
      _
    %668 = vsyncpa [#allocation6], 1
    %s669 = scalar_lea.sflag [#allocation6], 1
    %670 = vsyncpa %s669, 1

</llo_original>
